<compile_context>
chip_gen: v5e
topology: v5e:2x2
jax: 0.10.0
libtpu: 0.0.40
codegen_flags: <defaults>
</compile_context>

<pallas_src>
import functools

import jax
import jax.numpy as jnp
from jax.experimental import pallas as pl
from jax.experimental.pallas import tpu as pltpu

HID0 = 50
HID1 = 10
OUT = 2

_TB_CAP = 4096  # batch-tile cap (lane axis); multiple of 128


def _mlp_kernel(xt_ref, w0_ref, b0_ref, w1_ref, b1_ref, w2_ref, b2_ref, o_ref):
    """Feature-major fused MLP: lane axis == batch axis for every operand."""
    xt = xt_ref[...]                                                   # (D, TB) f32
    # fc0 + ReLU
    h0 = jnp.dot(w0_ref[...], xt, preferred_element_type=jnp.float32)  # (50, TB)
    h0 = jnp.maximum(h0 + b0_ref[...], 0.0)
    # fc1 + ReLU
    h1 = jnp.dot(w1_ref[...], h0, preferred_element_type=jnp.float32)  # (10, TB)
    h1 = jnp.maximum(h1 + b1_ref[...], 0.0)
    # fc3 (fc2 dropout is identity at inference)
    out = jnp.dot(w2_ref[...], h1, preferred_element_type=jnp.float32)  # (2, TB)
    o_ref[...] = (out + b2_ref[...]).astype(o_ref.dtype)


def _padded_bytes(shape, itemsize=4):
    """Bytes actually moved for a 2-D f32 array under TPU (8,128) tiling."""
    rows = -(-shape[-2] // 8) * 8
    cols = -(-shape[-1] // 128) * 128
    return rows * cols * itemsize


def _choose_tb(batch: int) -> int:
    # Single block for small/medium batches: best for single-TC v5e/v6e (no
    # forced split, one grid step).  Large batches tile at 4096 lanes so the
    # "parallel" grid axis can shard across v7x's two TensorCores.
    return batch if batch <= _TB_CAP else _TB_CAP


@functools.partial(jax.jit, static_argnames=("tb",))
def extractor_forward_fm(xt, w0, b0, w1, b1, w2, b2, *, tb=None):
    """Feature-major forward.

    xt: (input_size, batch) f32 -- batch on the lane axis.
    w*: PyTorch-layout weights (out, in); b*: (out,) biases.
    Returns (2, batch) f32.
    """
    D, B = xt.shape
    if tb is None:
        tb = _choose_tb(B)
    grid = (pl.cdiv(B, tb),)

    # Biases as (out, 1) columns so they broadcast over the batch lanes.
    b0c = b0.reshape(HID0, 1)
    b1c = b1.reshape(HID1, 1)
    b2c = b2.reshape(OUT, 1)

    flops = 2 * B * (D * HID0 + HID0 * HID1 + HID1 * OUT)
    bytes_accessed = (
        _padded_bytes((D, B))                  # x read (lane-dense)
        + _padded_bytes((OUT, B))              # output write (lane-dense)
        + _padded_bytes(w0.shape) + _padded_bytes(w1.shape) + _padded_bytes(w2.shape)
        + _padded_bytes((HID0, 1)) + _padded_bytes((HID1, 1)) + _padded_bytes((OUT, 1))
    )

    return pl.pallas_call(
        _mlp_kernel,
        out_shape=jax.ShapeDtypeStruct((OUT, B), jnp.float32),
        grid_spec=pltpu.PrefetchScalarGridSpec(
            num_scalar_prefetch=0,
            grid=grid,
            in_specs=[
                pl.BlockSpec((D, tb), lambda i: (0, i)),         # x tile
                pl.BlockSpec((HID0, D), lambda i: (0, 0)),       # W0 (out,in)
                pl.BlockSpec((HID0, 1), lambda i: (0, 0)),       # b0
                pl.BlockSpec((HID1, HID0), lambda i: (0, 0)),    # W1
                pl.BlockSpec((HID1, 1), lambda i: (0, 0)),       # b1
                pl.BlockSpec((OUT, HID1), lambda i: (0, 0)),     # W2
                pl.BlockSpec((OUT, 1), lambda i: (0, 0)),        # b2
            ],
            out_specs=pl.BlockSpec((OUT, tb), lambda i: (0, i)),
        ),
        compiler_params=pltpu.CompilerParams(
            dimension_semantics=("parallel",),
        ),
        cost_estimate=pl.CostEstimate(
            flops=flops, transcendentals=0, bytes_accessed=bytes_accessed),
    )(xt, w0, b0c, w1, b1c, w2, b2c)


@functools.partial(jax.jit, static_argnames=("tb",))
def extractor_forward(x, w0, b0, w1, b1, w2, b2, *, tb=None):
    """PyTorch-layout convenience wrapper: x (batch, input_size) -> (batch, 2).

    Callers that already hold feature-major activations should call
    extractor_forward_fm directly and skip the two tiny transposes here.
    """
    out_fm = extractor_forward_fm(x.T, w0, b0, w1, b1, w2, b2, tb=tb)
    return out_fm.T


def init_params(key, input_size):
    """Deterministic init mimicking torch.nn.Linear defaults, PyTorch layout."""
    def linear(k, fan_in, fan_out):
        kw, kb = jax.random.split(k)
        bound = 1.0 / jnp.sqrt(fan_in)
        w = jax.random.uniform(kw, (fan_out, fan_in), jnp.float32, -bound, bound)
        b = jax.random.uniform(kb, (fan_out,), jnp.float32, -bound, bound)
        return w, b

    k0, k1, k2 = jax.random.split(key, 3)
    w0, b0 = linear(k0, input_size, HID0)
    w1, b1 = linear(k1, HID0, HID1)
    w2, b2 = linear(k2, HID1, OUT)
    return w0, b0, w1, b1, w2, b2


def reference_forward(x, w0, b0, w1, b1, w2, b2):
    """f32 reference of the eval-mode forward (dropouts are identity)."""
    h0 = jnp.maximum(x @ w0.T + b0, 0.0)
    h1 = jnp.maximum(h0 @ w1.T + b1, 0.0)
    return h1 @ w2.T + b2


if __name__ == "__main__":
    key = jax.random.PRNGKey(0)
    kx, kp = jax.random.split(key)

    batch, input_size = 256, 32
    x = jax.random.normal(kx, (batch, input_size), jnp.float32)
    params = init_params(kp, input_size)

    # 1) Single-tile path (auto tile = full batch).
    out = jax.block_until_ready(extractor_forward(x, *params))
    ref = reference_forward(x, *params)
    assert out.shape == (batch, OUT)
    assert jnp.allclose(out, ref, atol=1e-3, rtol=1e-3), "mismatch vs reference"

    # 2) Tiny batch (block == full array dims, lanes < 128).
    x_small = x[:6]
    out_small = jax.block_until_ready(extractor_forward(x_small, *params))
    ref_small = reference_forward(x_small, *params)
    assert out_small.shape == (6, OUT)
    assert jnp.allclose(out_small, ref_small, atol=1e-3, rtol=1e-3), "mismatch (tiny)"

    # 3) Multi-step grid with a ragged boundary block (B=200, tb=128 -> 2 steps).
    x_ragged = x[:200]
    out_ragged = jax.block_until_ready(extractor_forward(x_ragged, *params, tb=128))
    ref_ragged = reference_forward(x_ragged, *params)
    assert out_ragged.shape == (200, OUT)
    assert jnp.allclose(out_ragged, ref_ragged, atol=1e-3, rtol=1e-3), "mismatch (ragged)"

    print("KERNEL_OK")
</pallas_src>

<mosaic_0001>
module attributes {stable_mosaic.version = 11 : i64} {
  func.func @_mlp_kernel(%arg0: i32, %arg1: memref<32x256xf32, #tpu.memory_space<vmem>>, %arg2: memref<50x32xf32, #tpu.memory_space<vmem>>, %arg3: memref<50x1xf32, #tpu.memory_space<vmem>>, %arg4: memref<10x50xf32, #tpu.memory_space<vmem>>, %arg5: memref<10x1xf32, #tpu.memory_space<vmem>>, %arg6: memref<2x10xf32, #tpu.memory_space<vmem>>, %arg7: memref<2x1xf32, #tpu.memory_space<vmem>>, %arg8: memref<2x256xf32, #tpu.memory_space<vmem>>) attributes {dimension_semantics = [#tpu.dimension_semantics<parallel>], iteration_bounds = array<i64: 1>, scalar_prefetch = 0 : i64, scratch_operands = 0 : i64, tpu.core_type = #tpu.core_type<tc>, window_params = [{transform_indices = @transform_0, window_bounds = array<i64: 32, 256>}, {pipeline_mode = #tpu.pipeline_mode<synchronous>, transform_indices = @transform_1, window_bounds = array<i64: 50, 32>}, {pipeline_mode = #tpu.pipeline_mode<synchronous>, transform_indices = @transform_2, window_bounds = array<i64: 50, 1>}, {pipeline_mode = #tpu.pipeline_mode<synchronous>, transform_indices = @transform_3, window_bounds = array<i64: 10, 50>}, {pipeline_mode = #tpu.pipeline_mode<synchronous>, transform_indices = @transform_4, window_bounds = array<i64: 10, 1>}, {pipeline_mode = #tpu.pipeline_mode<synchronous>, transform_indices = @transform_5, window_bounds = array<i64: 2, 10>}, {pipeline_mode = #tpu.pipeline_mode<synchronous>, transform_indices = @transform_6, window_bounds = array<i64: 2, 1>}, {transform_indices = @transform_7, window_bounds = array<i64: 2, 256>}]} {
    %c0 = arith.constant 0 : index
    %c0_0 = arith.constant 0 : index
    %0 = vector.load %arg1[%c0, %c0_0] : memref<32x256xf32, #tpu.memory_space<vmem>>, vector<32x256xf32>
    %c0_1 = arith.constant 0 : index
    %c0_2 = arith.constant 0 : index
    %1 = vector.load %arg2[%c0_1, %c0_2] : memref<50x32xf32, #tpu.memory_space<vmem>>, vector<50x32xf32>
    %cst = arith.constant dense<0.000000e+00> : vector<50x256xf32>
    %2 = tpu.matmul %1, %0, %cst {dimension_numbers = #tpu.dot_dimension_numbers<[1], [0], [0], [1], [0, 0, 1, 1], [], []>} : vector<50x32xf32>, vector<32x256xf32>, vector<50x256xf32> -> vector<50x256xf32>
    %c0_3 = arith.constant 0 : index
    %c0_4 = arith.constant 0 : index
    %3 = vector.load %arg3[%c0_3, %c0_4] : memref<50x1xf32, #tpu.memory_space<vmem>>, vector<50x1xf32>
    %4 = vector.broadcast %3 : vector<50x1xf32> to vector<50x256xf32>
    %5 = arith.addf %2, %4 : vector<50x256xf32>
    %cst_5 = arith.constant 0.000000e+00 : f32
    %6 = vector.broadcast %cst_5 : f32 to vector<50x256xf32>
    %7 = arith.maximumf %5, %6 : vector<50x256xf32>
    %c0_6 = arith.constant 0 : index
    %c0_7 = arith.constant 0 : index
    %8 = vector.load %arg4[%c0_6, %c0_7] : memref<10x50xf32, #tpu.memory_space<vmem>>, vector<10x50xf32>
    %cst_8 = arith.constant dense<0.000000e+00> : vector<10x256xf32>
    %9 = tpu.matmul %8, %7, %cst_8 {dimension_numbers = #tpu.dot_dimension_numbers<[1], [0], [0], [1], [0, 0, 1, 1], [], []>} : vector<10x50xf32>, vector<50x256xf32>, vector<10x256xf32> -> vector<10x256xf32>
    %c0_9 = arith.constant 0 : index
    %c0_10 = arith.constant 0 : index
    %10 = vector.load %arg5[%c0_9, %c0_10] : memref<10x1xf32, #tpu.memory_space<vmem>>, vector<10x1xf32>
    %11 = vector.broadcast %10 : vector<10x1xf32> to vector<10x256xf32>
    %12 = arith.addf %9, %11 : vector<10x256xf32>
    %cst_11 = arith.constant 0.000000e+00 : f32
    %13 = vector.broadcast %cst_11 : f32 to vector<10x256xf32>
    %14 = arith.maximumf %12, %13 : vector<10x256xf32>
    %c0_12 = arith.constant 0 : index
    %c0_13 = arith.constant 0 : index
    %15 = vector.load %arg6[%c0_12, %c0_13] : memref<2x10xf32, #tpu.memory_space<vmem>>, vector<2x10xf32>
    %cst_14 = arith.constant dense<0.000000e+00> : vector<2x256xf32>
    %16 = tpu.matmul %15, %14, %cst_14 {dimension_numbers = #tpu.dot_dimension_numbers<[1], [0], [0], [1], [0, 0, 1, 1], [], []>} : vector<2x10xf32>, vector<10x256xf32>, vector<2x256xf32> -> vector<2x256xf32>
    %c0_15 = arith.constant 0 : index
    %c0_16 = arith.constant 0 : index
    %17 = vector.load %arg7[%c0_15, %c0_16] : memref<2x1xf32, #tpu.memory_space<vmem>>, vector<2x1xf32>
    %18 = vector.broadcast %17 : vector<2x1xf32> to vector<2x256xf32>
    %19 = arith.addf %16, %18 : vector<2x256xf32>
    %c0_17 = arith.constant 0 : index
    %c0_18 = arith.constant 0 : index
    %20 = vector.load %arg8[%c0_17, %c0_18] : memref<2x256xf32, #tpu.memory_space<vmem>>, vector<2x256xf32>
    tpu.vector_store %arg8[%c0_17, %c0_18], %19 {strides = array<i32>} : memref<2x256xf32, #tpu.memory_space<vmem>>, vector<2x256xf32>,
    return
  }
  func.func @transform_0(%arg0: i32) -> (i32, i32) {
    %c0_i32 = arith.constant 0 : i32
    %c0_i32_0 = arith.constant 0 : i32
    return %c0_i32, %arg0 : i32, i32
  }
  func.func @transform_1(%arg0: i32) -> (i32, i32) {
    %c0_i32 = arith.constant 0 : i32
    %c0_i32_0 = arith.constant 0 : i32
    %c0_i32_1 = arith.constant 0 : i32
    return %c0_i32, %c0_i32_0 : i32, i32
  }
  func.func @transform_2(%arg0: i32) -> (i32, i32) {
    %c0_i32 = arith.constant 0 : i32
    %c0_i32_0 = arith.constant 0 : i32
    %c0_i32_1 = arith.constant 0 : i32
    return %c0_i32, %c0_i32_0 : i32, i32
  }
  func.func @transform_3(%arg0: i32) -> (i32, i32) {
    %c0_i32 = arith.constant 0 : i32
    %c0_i32_0 = arith.constant 0 : i32
    %c0_i32_1 = arith.constant 0 : i32
    return %c0_i32, %c0_i32_0 : i32, i32
  }
  func.func @transform_4(%arg0: i32) -> (i32, i32) {
    %c0_i32 = arith.constant 0 : i32
    %c0_i32_0 = arith.constant 0 : i32
    %c0_i32_1 = arith.constant 0 : i32
    return %c0_i32, %c0_i32_0 : i32, i32
  }
  func.func @transform_5(%arg0: i32) -> (i32, i32) {
    %c0_i32 = arith.constant 0 : i32
    %c0_i32_0 = arith.constant 0 : i32
    %c0_i32_1 = arith.constant 0 : i32
    return %c0_i32, %c0_i32_0 : i32, i32
  }
  func.func @transform_6(%arg0: i32) -> (i32, i32) {
    %c0_i32 = arith.constant 0 : i32
    %c0_i32_0 = arith.constant 0 : i32
    %c0_i32_1 = arith.constant 0 : i32
    return %c0_i32, %c0_i32_0 : i32, i32
  }
  func.func @transform_7(%arg0: i32) -> (i32, i32) {
    %c0_i32 = arith.constant 0 : i32
    %c0_i32_0 = arith.constant 0 : i32
    return %c0_i32, %arg0 : i32, i32
  }
}

</mosaic_0001>

<llo_original>
// kernel: extractor_forward_fm.1
$region0: #{extractor_forward_fm.1}
  #allocation0 [shape = 'u32[]', space=smem, size = 0x4, offset = 0x4, fixed_abs, tag = 'smem constant byte address 0x4 - core index']
  #allocation1 [shape = 'u32[72,128]{1,0:T(1,128)}', space=vmem, size = 0x9000, scoped, tag = 'internal scratch']
  %s0 = inlined_call_operand.vmem [shape: f32[32,256], index: 0, kind: input, shape index: {}]
  %s1 = inlined_call_operand.vmem [shape: f32[50,32], index: 1, kind: input, shape index: {}]
  %s2 = inlined_call_operand.vmem [shape: f32[50,1], index: 2, kind: input, shape index: {}]
  %s3 = inlined_call_operand.vmem [shape: f32[10,50], index: 3, kind: input, shape index: {}]
  %s4 = inlined_call_operand.vmem [shape: f32[10,1], index: 4, kind: input, shape index: {}]
  %s5 = inlined_call_operand.vmem [shape: f32[2,10], index: 5, kind: input, shape index: {}]
  %s6 = inlined_call_operand.vmem [shape: f32[2,1], index: 6, kind: input, shape index: {}]
  %s7 = inlined_call_operand.hbm [shape: f32[2,256], index: 7, kind: output, shape index: {}]
  %s8 = sld [smem:[#allocation0]]
  $region38: #{extractor_forward_fm.1} parent=0
    _
  %s10 = ssub.s32 1, %s8
  %s11 = scalar_select 0, %s10, %s8
  $region1: #{extractor_forward_fm.1} parent=0
    #allocation2 [shape = 'u8[2048]{0}', space=vmem, size = 0x800, scoped, tag = 'output window, operand 0, single buffered']
    #allocation3 [shape = 's32[1]{0}', space=sflag, size = 0x4, scoped, tag = 'scoped memory for extractor_forward_fm.1']
    %12 = vsyncpa [#allocation3], 0
    // Predicated region
    $region2: #{extractor_forward_fm.1} parent=1 // pred_check
      _
    $region3: #{extractor_forward_fm.1} parent=1 // pred_check_branch
      %14 = sbr.rel (0) target = $region5
    $region4: #{extractor_forward_fm.1} parent=1 // pred_region
      _
    $region5: #{extractor_forward_fm.1} parent=1 // pred_fallthru
      _
    // Predicated region
    $region6: #{extractor_forward_fm.1} parent=1 // pred_check
      _
    $region7: #{extractor_forward_fm.1} parent=1 // pred_check_branch
      %16 = sbr.rel (0) target = $region9
    $region8: #{extractor_forward_fm.1} parent=1 // pred_region
      _
    $region9: #{extractor_forward_fm.1} parent=1 // pred_fallthru
      _
    // Predicated region
    $region10: #{extractor_forward_fm.1} parent=1 // pred_check
      _
    $region11: #{extractor_forward_fm.1} parent=1 // pred_check_branch
      %18 = sbr.rel (0) target = $region13
    $region12: #{extractor_forward_fm.1} parent=1 // pred_region
      _
    $region13: #{extractor_forward_fm.1} parent=1 // pred_fallthru
      _
    // Predicated region
    $region14: #{extractor_forward_fm.1} parent=1 // pred_check
      _
    $region15: #{extractor_forward_fm.1} parent=1 // pred_check_branch
      %20 = sbr.rel (0) target = $region17
    $region16: #{extractor_forward_fm.1} parent=1 // pred_region
      _
    $region17: #{extractor_forward_fm.1} parent=1 // pred_fallthru
      _
    // Predicated region
    $region18: #{extractor_forward_fm.1} parent=1 // pred_check
      _
    $region19: #{extractor_forward_fm.1} parent=1 // pred_check_branch
      %22 = sbr.rel (0) target = $region21
    $region20: #{extractor_forward_fm.1} parent=1 // pred_region
      _
    $region21: #{extractor_forward_fm.1} parent=1 // pred_fallthru
      _
    // Predicated region
    $region22: #{extractor_forward_fm.1} parent=1 // pred_check
      _
    $region23: #{extractor_forward_fm.1} parent=1 // pred_check_branch
      %24 = sbr.rel (0) target = $region25
    $region24: #{extractor_forward_fm.1} parent=1 // pred_region
      _
    $region25: #{extractor_forward_fm.1} parent=1 // pred_fallthru
      _
    // Predicated region
    $region26: #{extractor_forward_fm.1} parent=1 // pred_check
      _
    $region27: #{extractor_forward_fm.1} parent=1 // pred_check_branch
      %26 = sbr.rel (0) target = $region29
    $region28: #{extractor_forward_fm.1} parent=1 // pred_region
      _
    $region29: #{extractor_forward_fm.1} parent=1 // pred_fallthru
      _
    %v27 = vld [vmem:[%s0] sm:$0xff]
    %v28 = vld [vmem:[%s0 + $0x8] sm:$0xff]
    %v29 = vld [vmem:[%s0 + $0x10] sm:$0xff]
    %v30 = vld [vmem:[%s0 + $0x18] sm:$0xff]
    %v31 = vld [vmem:[%s0 + $0x20] sm:$0xff]
    %v32 = vld [vmem:[%s0 + $0x28] sm:$0xff]
    %v33 = vld [vmem:[%s0 + $0x30] sm:$0xff]
    %v34 = vld [vmem:[%s0 + $0x38] sm:$0xff]
    %v35 = vld [vmem:[%s1] sm:$0xff]
    %v36 = vld [vmem:[%s1 + $0x8] sm:$0xff]
    %v37 = vld [vmem:[%s1 + $0x10] sm:$0xff]
    %v38 = vld [vmem:[%s1 + $0x18] sm:$0xff]
    %v39 = vld [vmem:[%s1 + $0x20] sm:$0xff]
    %v40 = vld [vmem:[%s1 + $0x28] sm:$0xff]
    %v41 = vld [vmem:[%s1 + $0x30] sm:$0x3]
    %v42 = vld [vmem:[%s2] sm:$0xff]
    %v43 = vld [vmem:[%s2 + $0x8] sm:$0xff]
    %v44 = vld [vmem:[%s2 + $0x10] sm:$0xff]
    %v45 = vld [vmem:[%s2 + $0x18] sm:$0xff]
    %v46 = vld [vmem:[%s2 + $0x20] sm:$0xff]
    %v47 = vld [vmem:[%s2 + $0x28] sm:$0xff]
    %v48 = vld [vmem:[%s2 + $0x30] sm:$0x3]
    %50 = vset.pattern.permute.xlu0 0
    %51 = vperm.xlu0 %50, %v42
    %v52 = vpop.permute.xlu0 %51
    %55 = vset.pattern.permute.xlu0 0
    %56 = vperm.xlu0 %55, %v43
    %v57 = vpop.permute.xlu0 %56
    %60 = vset.pattern.permute.xlu0 0
    %61 = vperm.xlu0 %60, %v44
    %v62 = vpop.permute.xlu0 %61
    %65 = vset.pattern.permute.xlu0 0
    %66 = vperm.xlu0 %65, %v45
    %v67 = vpop.permute.xlu0 %66
    %70 = vset.pattern.permute.xlu0 0
    %71 = vperm.xlu0 %70, %v46
    %v72 = vpop.permute.xlu0 %71
    %75 = vset.pattern.permute.xlu0 0
    %76 = vperm.xlu0 %75, %v47
    %v77 = vpop.permute.xlu0 %76
    %80 = vset.pattern.permute.xlu0 0
    %81 = vperm.xlu0 %80, %v48
    %v82 = vpop.permute.xlu0 %81
    %vm84 = vcmask 261120
    %v86 = vsel %vm84, %v35, 0
    %v89 = vsel %vm84, %v36, 0
    %v92 = vsel %vm84, %v37, 0
    %v95 = vsel %vm84, %v38, 0
    %v98 = vsel %vm84, %v39, 0
    %v101 = vsel %vm84, %v40, 0
    %v104 = vsel %vm84, %v41, 0
    %106 = vmatpush.msra.mxu0 0.0
    %107 = vmatpush.msra.mxu0 0.0
    %108 = vmatpush.msra.mxu0 0.0
    %109 = vmatpush.msra.mxu0 0.0
    %110 = vmatpush.msra.mxu0 0.0
    %111 = vmatpush.msra.mxu0 0.0
    %112 = vmatpush.msra.mxu0 0.0
    %113 = vmatpush.msra.mxu0 0.0
    %114 = vmatpush.msra.mxu0 0.0
    %115 = vmatpush.msra.mxu0 0.0
    %116 = vmatpush.msra.mxu0 0.0
    %117 = vmatpush.msra.mxu0 0.0
    %118 = vmatpush.msra.mxu0 %v33
    %119 = vmatpush.msra.mxu0 %v31
    %120 = vmatpush.msra.mxu0 %v29
    %121 = vmatpush.msra.mxu0 %v27
    %122 = vmatmul.f32.gmra.mxu0 %v86
    %v123 = vpop.f32.mrf.mxu0
    %v124 = vadd.f32 %v52, %v123
    %125 = vmatmul.f32.gmra.mxu0 %v89
    %v126 = vpop.f32.mrf.mxu0
    %v127 = vadd.f32 %v57, %v126
    %128 = vmatmul.f32.gmra.mxu0 %v92
    %v129 = vpop.f32.mrf.mxu0
    %v130 = vadd.f32 %v62, %v129
    %131 = vmatmul.f32.gmra.mxu0 %v95
    %v132 = vpop.f32.mrf.mxu0
    %v133 = vadd.f32 %v67, %v132
    %134 = vmatmul.f32.gmra.mxu0 %v98
    %v135 = vpop.f32.mrf.mxu0
    %v136 = vadd.f32 %v72, %v135
    %137 = vmatmul.f32.gmra.mxu0 %v101
    %v138 = vpop.f32.mrf.mxu0
    %v139 = vadd.f32 %v77, %v138
    %140 = vmatmul.f32.gmra.mxu0 %v104
    %v141 = vpop.f32.mrf.mxu0
    %v142 = vadd.f32 %v82, %v141
    %143 = vdwg.mxu0
    %144 = vmatpush.msra.mxu0 0.0
    %145 = vmatpush.msra.mxu0 0.0
    %146 = vmatpush.msra.mxu0 0.0
    %147 = vmatpush.msra.mxu0 0.0
    %148 = vmatpush.msra.mxu0 0.0
    %149 = vmatpush.msra.mxu0 0.0
    %150 = vmatpush.msra.mxu0 0.0
    %151 = vmatpush.msra.mxu0 0.0
    %152 = vmatpush.msra.mxu0 0.0
    %153 = vmatpush.msra.mxu0 0.0
    %154 = vmatpush.msra.mxu0 0.0
    %155 = vmatpush.msra.mxu0 0.0
    %156 = vmatpush.msra.mxu0 %v34
    %157 = vmatpush.msra.mxu0 %v32
    %158 = vmatpush.msra.mxu0 %v30
    %159 = vmatpush.msra.mxu0 %v28
    %160 = vmatmul.f32.gmra.mxu0 %v86
    %v161 = vpop.f32.mrf.mxu0
    %v162 = vadd.f32 %v52, %v161
    %163 = vmatmul.f32.gmra.mxu0 %v89
    %v164 = vpop.f32.mrf.mxu0
    %v165 = vadd.f32 %v57, %v164
    %166 = vmatmul.f32.gmra.mxu0 %v92
    %v167 = vpop.f32.mrf.mxu0
    %v168 = vadd.f32 %v62, %v167
    %169 = vmatmul.f32.gmra.mxu0 %v95
    %v170 = vpop.f32.mrf.mxu0
    %v171 = vadd.f32 %v67, %v170
    %172 = vmatmul.f32.gmra.mxu0 %v98
    %v173 = vpop.f32.mrf.mxu0
    %v174 = vadd.f32 %v72, %v173
    %175 = vmatmul.f32.gmra.mxu0 %v101
    %v176 = vpop.f32.mrf.mxu0
    %v177 = vadd.f32 %v77, %v176
    %178 = vmatmul.f32.gmra.mxu0 %v104
    %v179 = vpop.f32.mrf.mxu0
    %v180 = vadd.f32 %v82, %v179
    %181 = vdwg.mxu0
    %v182 = vmax.f32 %v124, 0.0
    %v183 = vmax.f32 %v162, 0.0
    %v184 = vmax.f32 %v127, 0.0
    %v185 = vmax.f32 %v165, 0.0
    %v186 = vmax.f32 %v130, 0.0
    %v187 = vmax.f32 %v168, 0.0
    %v188 = vmax.f32 %v133, 0.0
    %v189 = vmax.f32 %v171, 0.0
    %v190 = vmax.f32 %v136, 0.0
    %v191 = vmax.f32 %v174, 0.0
    %v192 = vmax.f32 %v139, 0.0
    %v193 = vmax.f32 %v177, 0.0
    %v194 = vmax.f32 %v142, 0.0
    %v195 = vmax.f32 %v180, 0.0
    %v196 = vld [vmem:[%s3] sm:$0xff]
    %v197 = vld [vmem:[%s3 + $0x8] sm:$0x3]
    %v198 = vld [vmem:[%s4] sm:$0xff]
    %v199 = vld [vmem:[%s4 + $0x8] sm:$0x3]
    %201 = vset.pattern.permute.xlu0 0
    %202 = vperm.xlu0 %201, %v198
    %v203 = vpop.permute.xlu0 %202
    %206 = vset.pattern.permute.xlu0 0
    %207 = vperm.xlu0 %206, %v199
    %v208 = vpop.permute.xlu0 %207
    %vm210 = vcmask 408576
    %v212 = vsel %vm210, %v196, 0
    %v215 = vsel %vm210, %v197, 0
    %vm217 = vcmask 1041408
    %v219 = vsel %vm217, %v194, 0
    %v222 = vsel %vm217, %v195, 0
    %224 = vmatpush.msra.mxu0 0.0
    %225 = vmatpush.msra.mxu0 0.0
    %226 = vmatpush.msra.mxu0 0.0
    %227 = vmatpush.msra.mxu0 0.0
    %228 = vmatpush.msra.mxu0 0.0
    %229 = vmatpush.msra.mxu0 0.0
    %230 = vmatpush.msra.mxu0 0.0
    %231 = vmatpush.msra.mxu0 0.0
    %232 = vmatpush.msra.mxu0 0.0
    %233 = vmatpush.msra.mxu0 %v219
    %234 = vmatpush.msra.mxu0 %v192
    %235 = vmatpush.msra.mxu0 %v190
    %236 = vmatpush.msra.mxu0 %v188
    %237 = vmatpush.msra.mxu0 %v186
    %238 = vmatpush.msra.mxu0 %v184
    %239 = vmatpush.msra.mxu0 %v182
    %240 = vmatmul.f32.gmra.mxu0 %v212
    %v241 = vpop.f32.mrf.mxu0
    %v242 = vadd.f32 %v203, %v241
    %243 = vmatmul.f32.gmra.mxu0 %v215
    %v244 = vpop.f32.mrf.mxu0
    %v245 = vadd.f32 %v208, %v244
    %246 = vdwg.mxu0
    %247 = vmatpush.msra.mxu0 0.0
    %248 = vmatpush.msra.mxu0 0.0
    %249 = vmatpush.msra.mxu0 0.0
    %250 = vmatpush.msra.mxu0 0.0
    %251 = vmatpush.msra.mxu0 0.0
    %252 = vmatpush.msra.mxu0 0.0
    %253 = vmatpush.msra.mxu0 0.0
    %254 = vmatpush.msra.mxu0 0.0
    %255 = vmatpush.msra.mxu0 0.0
    %256 = vmatpush.msra.mxu0 %v222
    %257 = vmatpush.msra.mxu0 %v193
    %258 = vmatpush.msra.mxu0 %v191
    %259 = vmatpush.msra.mxu0 %v189
    %260 = vmatpush.msra.mxu0 %v187
    %261 = vmatpush.msra.mxu0 %v185
    %262 = vmatpush.msra.mxu0 %v183
    %263 = vmatmul.f32.gmra.mxu0 %v212
    %v264 = vpop.f32.mrf.mxu0
    %v265 = vadd.f32 %v203, %v264
    %266 = vmatmul.f32.gmra.mxu0 %v215
    %v267 = vpop.f32.mrf.mxu0
    %v268 = vadd.f32 %v208, %v267
    %269 = vdwg.mxu0
    %v270 = vmax.f32 %v242, 0.0
    %v271 = vmax.f32 %v265, 0.0
    %v272 = vmax.f32 %v245, 0.0
    %v273 = vmax.f32 %v268, 0.0
    %v274 = vld [vmem:[%s5] sm:$0x3]
    %v275 = vld [vmem:[%s6] sm:$0x3]
    %277 = vset.pattern.permute.xlu0 0
    %278 = vperm.xlu0 %277, %v275
    %v279 = vpop.permute.xlu0 %278
    %vm281 = vcmask 80896
    %v283 = vsel %vm281, %v274, 0
    %v286 = vsel %vm217, %v272, 0
    %v289 = vsel %vm217, %v273, 0
    %291 = vmatpush.msra.mxu0 0.0
    %292 = vmatpush.msra.mxu0 0.0
    %293 = vmatpush.msra.mxu0 0.0
    %294 = vmatpush.msra.mxu0 0.0
    %295 = vmatpush.msra.mxu0 0.0
    %296 = vmatpush.msra.mxu0 0.0
    %297 = vmatpush.msra.mxu0 0.0
    %298 = vmatpush.msra.mxu0 0.0
    %299 = vmatpush.msra.mxu0 0.0
    %300 = vmatpush.msra.mxu0 0.0
    %301 = vmatpush.msra.mxu0 0.0
    %302 = vmatpush.msra.mxu0 0.0
    %303 = vmatpush.msra.mxu0 0.0
    %304 = vmatpush.msra.mxu0 0.0
    %305 = vmatpush.msra.mxu0 %v286
    %306 = vmatpush.msra.mxu0 %v270
    %307 = vmatmul.f32.gmra.mxu0 %v283
    %v308 = vpop.f32.mrf.mxu0
    %v309 = vadd.f32 %v279, %v308
    %310 = vdwg.mxu0
    %311 = vmatpush.msra.mxu0 0.0
    %312 = vmatpush.msra.mxu0 0.0
    %313 = vmatpush.msra.mxu0 0.0
    %314 = vmatpush.msra.mxu0 0.0
    %315 = vmatpush.msra.mxu0 0.0
    %316 = vmatpush.msra.mxu0 0.0
    %317 = vmatpush.msra.mxu0 0.0
    %318 = vmatpush.msra.mxu0 0.0
    %319 = vmatpush.msra.mxu0 0.0
    %320 = vmatpush.msra.mxu0 0.0
    %321 = vmatpush.msra.mxu0 0.0
    %322 = vmatpush.msra.mxu0 0.0
    %323 = vmatpush.msra.mxu0 0.0
    %324 = vmatpush.msra.mxu0 0.0
    %325 = vmatpush.msra.mxu0 %v289
    %326 = vmatpush.msra.mxu0 %v271
    %327 = vmatmul.f32.gmra.mxu0 %v283
    %v328 = vpop.f32.mrf.mxu0
    %v329 = vadd.f32 %v279, %v328
    %330 = vdwg.mxu0
    %v333 = vrot.slane %v329, 6
    %v334 = vsel %vm217, %v309, %v333
    %336 = vst [vmem:[#allocation2] sm:$0xf] %v334
    // Predicated region
    $region30: #{extractor_forward_fm.1} parent=1 // pred_check
      _
    $region31: #{extractor_forward_fm.1} parent=1 // pred_check_branch
      %338 = sbr.rel (0) target = $region33
    $region32: #{extractor_forward_fm.1} parent=1 // pred_region
      %340 = vsyncadd [#allocation3], 0
      %s342 = sshll.u32 [#allocation2], 4
      %s343 = int_to_ptr.vmem [resolvable:$true] %s342
      %s344 = sshll.u32 %s7, 4
      %s345 = int_to_ptr.hbm [resolvable:$true] %s344
      %347 = dma.vmem_to_hbm [thread:$0]  %s343, 64, %s345, [#allocation3]
    $region33: #{extractor_forward_fm.1} parent=1 // pred_fallthru
      _
    // Predicated region
    $region34: #{extractor_forward_fm.1} parent=1 // pred_check
      _
    $region35: #{extractor_forward_fm.1} parent=1 // pred_check_branch
      %349 = sbr.rel (0) target = $region37
    $region36: #{extractor_forward_fm.1} parent=1 // pred_region
      %351 = dma.done [#allocation3], 64
    $region37: #{extractor_forward_fm.1} parent=1 // pred_fallthru
      _
    %352 = vsyncpa [#allocation3], 1

</llo_original>
